<compile_context>
chip_gen: v6e
topology: v6e:2x2x1
jax: 0.10.0
libtpu: 0.0.40
codegen_flags: <defaults>
</compile_context>

<pallas_src>
import math

import numpy as np
import jax
import jax.numpy as jnp
from jax.experimental import pallas as pl
from jax.experimental.pallas import tpu as pltpu


def _round_up(x: int, m: int) -> int:
    return ((x + m - 1) // m) * m


def _pick_tile(dim: int, cap: int, unit: int):
    """Return (tile, padded_dim).

    If dim fits in one tile, use the full dim (no padding, allowed by the
    "block equals full array dim" rule). Otherwise pick a unit-multiple tile
    <= cap, preferring one that divides dim exactly so no padding is needed.
    """
    if dim <= cap:
        return dim, dim
    best = max(unit, cap - cap % unit)
    for cand in range(best, unit - 1, -unit):
        if dim % cand == 0:
            return cand, dim
    return best, _round_up(dim, best)


_VMEM_LIMIT_CACHE = None


def _vmem_limit_bytes() -> int:
    """Half of the per-TensorCore VMEM, clamped to [32 MiB, 64 MiB].

    v5e/v6e (128 MiB/TC) -> 64 MiB; v7x (64 MiB/TC) -> 32 MiB. Never request
    the whole VMEM: Mosaic needs headroom for internal scratch + pipelining.
    """
    global _VMEM_LIMIT_CACHE
    if _VMEM_LIMIT_CACHE is None:
        try:
            cap = int(pltpu.get_tpu_info().vmem_capacity_bytes)
        except Exception:
            cap = 64 * 1024 * 1024  # conservative fallback
        _VMEM_LIMIT_CACHE = int(min(64 * 1024 * 1024,
                                    max(32 * 1024 * 1024, cap // 2)))
    return _VMEM_LIMIT_CACHE


def _linear_single_k_kernel(x_ref, w_ref, b_ref, o_ref):
    # Whole K in one tile: no accumulator scratch, no init/finalize branches.
    acc = jnp.dot(x_ref[...], w_ref[...], preferred_element_type=jnp.float32)
    o_ref[...] = (acc + b_ref[...]).astype(o_ref.dtype)


def _linear_multi_k_kernel(x_ref, w_ref, b_ref, o_ref, acc_ref):
    # Grid = (M tiles, N tiles, K tiles); K is last ("arbitrary") = reduction.
    k = pl.program_id(2)

    @pl.when(k == 0)
    def _init():
        acc_ref[...] = jnp.zeros_like(acc_ref)

    # x tile (tm, tk) @ w tile (tk, tn): plain MXU matmul, no trans-B relayout.
    acc_ref[...] += jnp.dot(x_ref[...], w_ref[...],
                            preferred_element_type=jnp.float32)

    @pl.when(k == pl.num_programs(2) - 1)
    def _finalize():
        o_ref[...] = (acc_ref[...] + b_ref[...]).astype(o_ref.dtype)


class LogisticRegressionModel:
    """Pallas-TPU equivalent of the PyTorch module: out = x @ W^T + b.

    `weight` is accepted in the PyTorch nn.Linear layout [output_dim, input_dim];
    the transpose / cast / padding happens once here (init), not per call.
    """

    def __init__(self, weight, bias, *, tm=512, tn=512, tk=1024,
                 compute_dtype=None):
        weight = jnp.asarray(weight)
        bias = jnp.asarray(bias)
        N, K = weight.shape
        assert bias.shape == (N,)
        self.K, self.N = K, N
        self.compute_dtype = (np.dtype(compute_dtype) if compute_dtype is not None
                              else np.dtype(weight.dtype))
        self.tm_cap = tm
        self.tk, self.Kp = _pick_tile(K, tk, 128)
        self.tn, self.Np = _pick_tile(N, tn, 128)

        # --- one-time parameter prep (transpose to [K, N], cast, zero-pad) ---
        w_t = weight.T.astype(self.compute_dtype)
        if (self.Kp, self.Np) != (K, N):
            w_t = jnp.pad(w_t, ((0, self.Kp - K), (0, self.Np - N)))
        self.w_t = w_t
        b = bias.astype(jnp.float32)
        if self.Np != N:
            b = jnp.pad(b, (0, self.Np - N))
        self.b = b.reshape(1, self.Np)

    def __call__(self, x):
        M, K = x.shape
        assert K == self.K
        out_dtype = x.dtype
        # bf16 packs 16 rows per sublane-vreg -> raise the M tile floor to 16.
        m_unit = 16 if self.compute_dtype == jnp.bfloat16 else 8
        tm, Mp = _pick_tile(M, self.tm_cap, m_unit)
        tn, Np, tk, Kp = self.tn, self.Np, self.tk, self.Kp

        xc = x.astype(self.compute_dtype)
        if (Mp, Kp) != (M, K):  # pad x only when genuinely unavoidable
            xc = jnp.pad(xc, ((0, Mp - M), (0, Kp - K)))

        gm, gn, gk = Mp // tm, Np // tn, Kp // tk
        in_item = np.dtype(self.compute_dtype).itemsize
        cost = pl.CostEstimate(
            flops=2 * M * self.N * K,
            transcendentals=0,
            bytes_accessed=int(M * K * gn * in_item            # x re-read per N tile
                               + self.N * K * gm * in_item     # W re-read per M tile
                               + M * self.N * np.dtype(out_dtype).itemsize
                               + self.N * 4),
        )
        cparams_common = dict(vmem_limit_bytes=_vmem_limit_bytes())

        if gk == 1:
            out = pl.pallas_call(
                _linear_single_k_kernel,
                out_shape=jax.ShapeDtypeStruct((Mp, Np), out_dtype),
                grid_spec=pltpu.PrefetchScalarGridSpec(
                    num_scalar_prefetch=0,
                    grid=(gm, gn),
                    in_specs=[
                        pl.BlockSpec((tm, tk), lambda i, j: (i, 0)),   # x
                        pl.BlockSpec((tk, tn), lambda i, j: (0, j)),   # W^T ([K,N])
                        pl.BlockSpec((1, tn), lambda i, j: (0, j)),    # bias
                    ],
                    out_specs=pl.BlockSpec((tm, tn), lambda i, j: (i, j)),
                ),
                compiler_params=pltpu.CompilerParams(
                    dimension_semantics=("parallel", "parallel"),
                    **cparams_common,
                ),
                cost_estimate=cost,
            )(xc, self.w_t, self.b)
        else:
            out = pl.pallas_call(
                _linear_multi_k_kernel,
                out_shape=jax.ShapeDtypeStruct((Mp, Np), out_dtype),
                grid_spec=pltpu.PrefetchScalarGridSpec(
                    num_scalar_prefetch=0,
                    grid=(gm, gn, gk),
                    in_specs=[
                        pl.BlockSpec((tm, tk), lambda i, j, k: (i, k)),  # x
                        pl.BlockSpec((tk, tn), lambda i, j, k: (k, j)),  # W^T ([K,N])
                        pl.BlockSpec((1, tn), lambda i, j, k: (0, j)),   # bias
                    ],
                    out_specs=pl.BlockSpec((tm, tn), lambda i, j, k: (i, j)),
                    scratch_shapes=[pltpu.VMEM((tm, tn), jnp.float32)],
                ),
                compiler_params=pltpu.CompilerParams(
                    dimension_semantics=("parallel", "parallel", "arbitrary"),
                    **cparams_common,
                ),
                cost_estimate=cost,
            )(xc, self.w_t, self.b)

        if (Mp, Np) != (M, self.N):
            out = out[:M, :self.N]
        return out


if __name__ == "__main__":
    key = jax.random.PRNGKey(0)
    kx, kw, kb, kx2, kw2, kb2 = jax.random.split(key, 6)

    # --- Case 1: module-natural tiny shapes, f32, single-K fast path ---------
    batch, input_dim, output_dim = 8, 32, 16
    x = jax.random.normal(kx, (batch, input_dim), dtype=jnp.float32)
    bound = 1.0 / math.sqrt(input_dim)  # mimic nn.Linear init ranges
    weight = jax.random.uniform(kw, (output_dim, input_dim), jnp.float32, -bound, bound)
    bias = jax.random.uniform(kb, (output_dim,), jnp.float32, -bound, bound)

    model = LogisticRegressionModel(weight, bias)
    out = jax.block_until_ready(model(x))
    ref = x @ weight.T + bias
    assert out.shape == (batch, output_dim)
    assert jnp.allclose(out, ref, atol=1e-5, rtol=1e-5)

    # --- Case 2: bf16 compute, multi-K accumulator path ----------------------
    M2, K2, N2 = 256, 2048, 256
    x2 = jax.random.normal(kx2, (M2, K2), dtype=jnp.float32)
    w2 = jax.random.normal(kw2, (N2, K2), dtype=jnp.float32) * (1.0 / math.sqrt(K2))
    b2 = jax.random.normal(kb2, (N2,), dtype=jnp.float32)

    model2 = LogisticRegressionModel(w2, b2, compute_dtype=jnp.bfloat16)
    out2 = jax.block_until_ready(model2(x2))
    ref2 = (x2.astype(jnp.bfloat16).astype(jnp.float32)
            @ w2.T.astype(jnp.bfloat16).astype(jnp.float32)) + b2
    assert out2.shape == (M2, N2)
    assert jnp.allclose(out2, ref2, atol=1e-2, rtol=1e-2)

    print("KERNEL_OK")
</pallas_src>

<mosaic_0001>
module attributes {stable_mosaic.version = 11 : i64} {
  func.func @_linear_single_k_kernel(%arg0: i32, %arg1: i32, %arg2: memref<8x32xf32, #tpu.memory_space<vmem>>, %arg3: memref<32x16xf32, #tpu.memory_space<vmem>>, %arg4: memref<1x16xf32, #tpu.memory_space<vmem>>, %arg5: memref<8x16xf32, #tpu.memory_space<vmem>>) attributes {dimension_semantics = [#tpu.dimension_semantics<parallel>, #tpu.dimension_semantics<parallel>], iteration_bounds = array<i64: 1, 1>, scalar_prefetch = 0 : i64, scratch_operands = 0 : i64, tpu.core_type = #tpu.core_type<tc>, window_params = [{transform_indices = @transform_0, window_bounds = array<i64: 8, 32>}, {transform_indices = @transform_1, window_bounds = array<i64: 32, 16>}, {transform_indices = @transform_2, window_bounds = array<i64: 1, 16>}, {transform_indices = @transform_3, window_bounds = array<i64: 8, 16>}]} {
    %c0 = arith.constant 0 : index
    %c0_0 = arith.constant 0 : index
    %0 = vector.load %arg2[%c0, %c0_0] : memref<8x32xf32, #tpu.memory_space<vmem>>, vector<8x32xf32>
    %c0_1 = arith.constant 0 : index
    %c0_2 = arith.constant 0 : index
    %1 = vector.load %arg3[%c0_1, %c0_2] : memref<32x16xf32, #tpu.memory_space<vmem>>, vector<32x16xf32>
    %cst = arith.constant dense<0.000000e+00> : vector<8x16xf32>
    %2 = tpu.matmul %0, %1, %cst {dimension_numbers = #tpu.dot_dimension_numbers<[1], [0], [0], [1], [0, 0, 1, 1], [], []>} : vector<8x32xf32>, vector<32x16xf32>, vector<8x16xf32> -> vector<8x16xf32>
    %c0_3 = arith.constant 0 : index
    %c0_4 = arith.constant 0 : index
    %3 = vector.load %arg4[%c0_3, %c0_4] : memref<1x16xf32, #tpu.memory_space<vmem>>, vector<1x16xf32>
    %4 = vector.broadcast %3 : vector<1x16xf32> to vector<8x16xf32>
    %5 = arith.addf %2, %4 : vector<8x16xf32>
    %c0_5 = arith.constant 0 : index
    %c0_6 = arith.constant 0 : index
    %6 = vector.load %arg5[%c0_5, %c0_6] : memref<8x16xf32, #tpu.memory_space<vmem>>, vector<8x16xf32>
    tpu.vector_store %arg5[%c0_5, %c0_6], %5 {strides = array<i32>} : memref<8x16xf32, #tpu.memory_space<vmem>>, vector<8x16xf32>,
    return
  }
  func.func @transform_0(%arg0: i32, %arg1: i32) -> (i32, i32) {
    %c0_i32 = arith.constant 0 : i32
    %c0_i32_0 = arith.constant 0 : i32
    return %arg0, %c0_i32 : i32, i32
  }
  func.func @transform_1(%arg0: i32, %arg1: i32) -> (i32, i32) {
    %c0_i32 = arith.constant 0 : i32
    %c0_i32_0 = arith.constant 0 : i32
    return %c0_i32, %arg1 : i32, i32
  }
  func.func @transform_2(%arg0: i32, %arg1: i32) -> (i32, i32) {
    %c0_i32 = arith.constant 0 : i32
    %c0_i32_0 = arith.constant 0 : i32
    return %c0_i32, %arg1 : i32, i32
  }
  func.func @transform_3(%arg0: i32, %arg1: i32) -> (i32, i32) {
    %c0_i32 = arith.constant 0 : i32
    return %arg0, %arg1 : i32, i32
  }
}

</mosaic_0001>

<llo_original>
// kernel: tpu_custom_call.1
$region0: #{tpu_custom_call.1}
  #allocation0 [shape = 'u32[]', space=smem, size = 0x4, offset = 0x4, fixed_abs, tag = 'smem constant byte address 0x4 - core index']
  #allocation1 [shape = 'u32[144,128]{1,0:T(1,128)}', space=vmem, size = 0x12000, scoped, tag = 'internal scratch']
  %s0 = inlined_call_operand.vmem [shape: f32[8,32], index: 0, kind: input, shape index: {}]
  %s1 = inlined_call_operand.vmem [shape: f32[32,16], index: 1, kind: input, shape index: {}]
  %s2 = inlined_call_operand.vmem [shape: f32[1,16], index: 2, kind: input, shape index: {}]
  %s3 = inlined_call_operand.hbm [shape: f32[8,16], index: 3, kind: output, shape index: {}]
  %s4 = sld [smem:[#allocation0]]
  $region22: #{tpu_custom_call.1} parent=0
    _
  %s6 = ssub.s32 1, %s4
  %s7 = scalar_select 0, %s6, %s4
  $region1: #{tpu_custom_call.1} parent=0
    #allocation2 [shape = 'u8[4096]{0}', space=vmem, size = 0x1000, scoped, tag = 'output window, operand 0, single buffered']
    #allocation3 [shape = 's32[1]{0}', space=sflag, size = 0x4, scoped, tag = 'scoped memory for tpu_custom_call.1']
    %8 = vsyncpa [#allocation3], 0
    // Predicated region
    $region2: #{tpu_custom_call.1} parent=1 // pred_check
      _
    $region3: #{tpu_custom_call.1} parent=1 // pred_check_branch
      %10 = sbr.rel (0) target = $region5
    $region4: #{tpu_custom_call.1} parent=1 // pred_region
      _
    $region5: #{tpu_custom_call.1} parent=1 // pred_fallthru
      _
    // Predicated region
    $region6: #{tpu_custom_call.1} parent=1 // pred_check
      _
    $region7: #{tpu_custom_call.1} parent=1 // pred_check_branch
      %12 = sbr.rel (0) target = $region9
    $region8: #{tpu_custom_call.1} parent=1 // pred_region
      _
    $region9: #{tpu_custom_call.1} parent=1 // pred_fallthru
      _
    // Predicated region
    $region10: #{tpu_custom_call.1} parent=1 // pred_check
      _
    $region11: #{tpu_custom_call.1} parent=1 // pred_check_branch
      %14 = sbr.rel (0) target = $region13
    $region12: #{tpu_custom_call.1} parent=1 // pred_region
      _
    $region13: #{tpu_custom_call.1} parent=1 // pred_fallthru
      _
    %v15 = vld [vmem:[%s0] sm:$0xff]
    %v16 = vld [vmem:[%s1] sm:$0xff]
    %v17 = vld [vmem:[%s1 + $0x8] sm:$0xff]
    %v18 = vld [vmem:[%s1 + $0x10] sm:$0xff]
    %v19 = vld [vmem:[%s1 + $0x18] sm:$0xff]
    %v20 = vld [vmem:[%s2] sm:$0x1]
    %v22 = vlaneseq
    %v23 = vshrl.u32 %v22, 7
    %v24 = vsub.s32 0, %v23
    %v25 = vrot.slane %v20, %v24
    %vm27 = vcmask 261120
    %v29 = vsel %vm27, %v15, 0
    %31 = vmatprep.subr.mxu0 0.0
    %32 = vmatpush1.msra.mxu0 0.0
    %33 = vmatprep.subr.mxu0 0.0
    %34 = vmatpush1.msra.mxu0 0.0
    %35 = vmatprep.subr.mxu0 0.0
    %36 = vmatpush1.msra.mxu0 0.0
    %37 = vmatprep.subr.mxu0 0.0
    %38 = vmatpush1.msra.mxu0 0.0
    %39 = vmatprep.subr.mxu0 0.0
    %40 = vmatpush1.msra.mxu0 0.0
    %41 = vmatprep.subr.mxu0 0.0
    %42 = vmatpush1.msra.mxu0 0.0
    %43 = vmatprep.subr.mxu0 0.0
    %44 = vmatpush1.msra.mxu0 0.0
    %45 = vmatprep.subr.mxu0 0.0
    %46 = vmatpush1.msra.mxu0 0.0
    %47 = vmatprep.subr.mxu0 0.0
    %48 = vmatpush1.msra.mxu0 0.0
    %49 = vmatprep.subr.mxu0 0.0
    %50 = vmatpush1.msra.mxu0 0.0
    %51 = vmatprep.subr.mxu0 0.0
    %52 = vmatpush1.msra.mxu0 0.0
    %53 = vmatprep.subr.mxu0 0.0
    %54 = vmatpush1.msra.mxu0 0.0
    %55 = vmatprep.subr.mxu0 0.0
    %56 = vmatpush1.msra.mxu0 %v19
    %57 = vmatprep.subr.mxu0 0.0
    %58 = vmatpush1.msra.mxu0 %v18
    %59 = vmatprep.subr.mxu0 0.0
    %60 = vmatpush1.msra.mxu0 %v17
    %61 = vmatprep.subr.mxu0 0.0
    %62 = vmatpush1.msra.mxu0 %v16
    %63 = vmatprep.subr.mxu0 0.0
    %64 = vmatpush2.msra.mxu0 0.0
    %65 = vmatprep.subr.mxu0 0.0
    %66 = vmatpush2.msra.mxu0 0.0
    %67 = vmatprep.subr.mxu0 0.0
    %68 = vmatpush2.msra.mxu0 0.0
    %69 = vmatprep.subr.mxu0 0.0
    %70 = vmatpush2.msra.mxu0 0.0
    %71 = vmatprep.subr.mxu0 0.0
    %72 = vmatpush2.msra.mxu0 0.0
    %73 = vmatprep.subr.mxu0 0.0
    %74 = vmatpush2.msra.mxu0 0.0
    %75 = vmatprep.subr.mxu0 0.0
    %76 = vmatpush2.msra.mxu0 0.0
    %77 = vmatprep.subr.mxu0 0.0
    %78 = vmatpush2.msra.mxu0 0.0
    %79 = vmatprep.subr.mxu0 0.0
    %80 = vmatpush2.msra.mxu0 0.0
    %81 = vmatprep.subr.mxu0 0.0
    %82 = vmatpush2.msra.mxu0 0.0
    %83 = vmatprep.subr.mxu0 0.0
    %84 = vmatpush2.msra.mxu0 0.0
    %85 = vmatprep.subr.mxu0 0.0
    %86 = vmatpush2.msra.mxu0 0.0
    %87 = vmatprep.subr.mxu0 0.0
    %88 = vmatpush2.msra.mxu0 0.0
    %89 = vmatprep.subr.mxu0 0.0
    %90 = vmatpush2.msra.mxu0 0.0
    %91 = vmatprep.subr.mxu0 0.0
    %92 = vmatpush2.msra.mxu0 0.0
    %93 = vmatprep.subr.mxu0 0.0
    %94 = vmatpush2.msra.mxu0 0.0
    %95 = vmatprep.mubr.f32.mxu0 0.0
    %96 = vmatmul.mubr.f32.gmra.mxu0 %v29
    %v97 = vpop.f32.mrf.mxu0
    %v98 = vadd.f32 %v25, %v97
    %v99 = vpop.f32.mrf.mxu0
    %100 = vdwg.mxu0
    %vm101 = vcmask 130048
    %102 = vst.msk [vmem:[#allocation2] sm:$0xff] %vm101, %v98
    // Predicated region
    $region14: #{tpu_custom_call.1} parent=1 // pred_check
      _
    $region15: #{tpu_custom_call.1} parent=1 // pred_check_branch
      %104 = sbr.rel (0) target = $region17
    $region16: #{tpu_custom_call.1} parent=1 // pred_region
      %s106 = ssub.s32 128, 128
      %107 = vsyncadd [#allocation3], %s106
      %s109 = sshll.u32 [#allocation2], 4
      %s110 = int_to_ptr.vmem [resolvable:$true] %s109
      %112 = dma.vmem_to_hbm [thread:$0]  %s110, 128, %s3, [#allocation3]
    $region17: #{tpu_custom_call.1} parent=1 // pred_fallthru
      _
    // Predicated region
    $region18: #{tpu_custom_call.1} parent=1 // pred_check
      _
    $region19: #{tpu_custom_call.1} parent=1 // pred_check_branch
      %114 = sbr.rel (0) target = $region21
    $region20: #{tpu_custom_call.1} parent=1 // pred_region
      %115 = dma.done [#allocation3], 128
    $region21: #{tpu_custom_call.1} parent=1 // pred_fallthru
      _
    %116 = vsyncpa [#allocation3], 1

</llo_original>
